<compile_context>
chip_gen: v7x
topology: tpu7x:2x2x1
jax: 0.10.0
libtpu: 0.0.40
codegen_flags: <defaults>
</compile_context>

<pallas_src>
import functools

import jax
import jax.numpy as jnp
from jax import lax
from jax.experimental import pallas as pl
from jax.experimental.pallas import tpu as pltpu


def _self_attention_kernel(x_ref, w_ref, b_ref, g_ref, o_ref, *, cq_pad, channels):
    """x_ref: (Bt, C, N) bf16; w_ref: (2*cq_pad+C, C) bf16; b_ref: (2*cq_pad+C, 1) f32;
    g_ref: (1, 1) f32 in SMEM; o_ref: (Bt, C, N) f32."""
    gamma = g_ref[0, 0]                      # scalar read from SMEM
    w = w_ref[...]
    b = b_ref[...]
    v_row = 2 * cq_pad
    bt = x_ref.shape[0]

    # Bt is a small static constant; unrolled Python loop keeps all indices static.
    for bi in range(bt):
        x = x_ref[bi]                                                    # (C, N) bf16

        # Fused q/k/v projection: one (2*Cq_pad+C, C) @ (C, N) MXU matmul.
        # Padded q/k rows have zero weights and zero bias, so they contribute
        # exactly zero to the energy contraction below.
        qkv = jnp.dot(w, x, preferred_element_type=jnp.float32) + b     # (rows, N) f32
        q = qkv[0:cq_pad].astype(jnp.bfloat16)                          # (Cq_pad, N)
        k = qkv[cq_pad:v_row].astype(jnp.bfloat16)                      # (Cq_pad, N)
        v = qkv[v_row:v_row + channels].astype(jnp.bfloat16)            # (C, N)

        # energy_t[m, n] = <k_m, q_n>  (== torch's energy[n, m]); keys on the
        # sublane axis, queries on the lane axis, no explicit transpose.
        # TODO(synk): for production SAGAN resolutions (N = H*W >= ~2k) this
        # (N, N) score matrix should be key-tiled with an online softmax
        # (flash-style); monolithic (N, N) exceeds v7x's 64 MiB VMEM.
        energy = lax.dot_general(k, q, (((0,), (0,)), ((), ())),
                                 preferred_element_type=jnp.float32)    # (N, N) f32

        # Softmax over the key axis (axis 0); normalization deferred to the
        # output scale so the (N, N) divide disappears.
        energy = energy - jnp.max(energy, axis=0, keepdims=True)
        p = jnp.exp(energy)                                             # (N, N) f32
        inv_denom = pl.reciprocal(jnp.sum(p, axis=0, keepdims=True),
                                  approx=True)                          # (1, N), EUP

        # out[c, n] = sum_m v[c, m] * attention[n, m]
        out = jnp.dot(v, p.astype(jnp.bfloat16),
                      preferred_element_type=jnp.float32)               # (C, N) f32
        out = out * inv_denom                                           # deferred 1/Z

        o_ref[bi] = gamma * out + x.astype(jnp.float32)


def self_attention_pallas(x_nchw, wq, bq, wk, bk, wv, bv, gamma, *, batch_block=None):
    """Forward pass of the SAGAN SelfAttention module.

    x_nchw: (B, C, H, W) f32.  wq/wk: (C//8, C) and wv: (C, C) 1x1-conv weights
    (stored as (Cout, Cin)), bq/bk/bv matching biases, gamma a scalar.
    """
    B, C, H, W = x_nchw.shape
    N = H * W
    Cq = wq.shape[0]

    # Pad the q/k channel count to a sublane multiple so in-kernel row slices
    # of the fused qkv projection stay (8,128)-tile aligned.
    cq_pad = max(8, -(-Cq // 8) * 8)
    rows = 2 * cq_pad + C

    # Stack [Wq; Wk; Wv] (zero padded) so the three 1x1 convs fuse into one matmul.
    w_all = jnp.zeros((rows, C), jnp.float32)
    w_all = w_all.at[:Cq].set(wq)
    w_all = w_all.at[cq_pad:cq_pad + Cq].set(wk)
    w_all = w_all.at[2 * cq_pad:2 * cq_pad + C].set(wv)
    b_all = jnp.zeros((rows, 1), jnp.float32)
    b_all = b_all.at[:Cq, 0].set(bq)
    b_all = b_all.at[cq_pad:cq_pad + Cq, 0].set(bk)
    b_all = b_all.at[2 * cq_pad:2 * cq_pad + C, 0].set(bv)

    # bf16 matmul inputs: halves the dominant HBM traffic (x) and runs the MXU
    # at native bf16 rate.  Softmax / residual math stays f32 in-kernel.
    x_tok = x_nchw.reshape(B, C, N).astype(jnp.bfloat16)   # free reshape, no transpose
    w_all = w_all.astype(jnp.bfloat16)
    g_arr = jnp.asarray(gamma, jnp.float32).reshape(1, 1)

    # Keep >= 2 parallel grid steps (v7x has 2 TensorCores) while merging a
    # couple of images per step to amortize per-grid-step overhead on v5e/v6e.
    if batch_block is None:
        batch_block = 2 if (B % 2 == 0 and B >= 4) else 1
    assert B % batch_block == 0, "batch_block must divide the batch size"
    grid = (B // batch_block,)

    kernel = functools.partial(_self_attention_kernel, cq_pad=cq_pad, channels=C)

    # Advisory cost estimate so XLA overlaps neighbours with this latency-bound call.
    flops = 2 * B * (rows * C * N + cq_pad * N * N + C * N * N) + 4 * B * C * N
    transcendentals = B * N * (N + 1)
    bytes_accessed = B * C * N * (2 + 4) + rows * C * 2 + rows * 4 + 4

    # Rough VMEM budget: double-buffered I/O blocks + per-step intermediates.
    per_step = (2 * batch_block * C * N * (2 + 4)
                + 2 * (rows * C * 2 + rows * 4)
                + batch_block * (rows * N + 2 * N * N + 2 * C * N) * 4)
    vmem_limit = int(min(64 * 1024 * 1024, max(16 * 1024 * 1024, 2 * per_step)))

    out_tok = pl.pallas_call(
        kernel,
        out_shape=jax.ShapeDtypeStruct((B, C, N), jnp.float32),
        grid_spec=pltpu.PrefetchScalarGridSpec(
            num_scalar_prefetch=0,
            grid=grid,
            in_specs=[
                pl.BlockSpec((batch_block, C, N), lambda i: (i, 0, 0)),   # x block
                pl.BlockSpec((rows, C), lambda i: (0, 0)),                # [Wq;Wk;Wv]
                pl.BlockSpec((rows, 1), lambda i: (0, 0)),                # [bq;bk;bv]
                pl.BlockSpec(memory_space=pltpu.MemorySpace.SMEM),        # gamma scalar
            ],
            out_specs=pl.BlockSpec((batch_block, C, N), lambda i: (i, 0, 0)),
        ),
        compiler_params=pltpu.CompilerParams(
            dimension_semantics=("parallel",),
            vmem_limit_bytes=vmem_limit),
        cost_estimate=pl.CostEstimate(flops=flops,
                                      transcendentals=transcendentals,
                                      bytes_accessed=bytes_accessed),
    )(x_tok, w_all, b_all, g_arr)

    # (B, C, N) -> (B, C, H, W): free reshape, channel-major layout preserved.
    return out_tok.reshape(B, C, H, W)


def self_attention_reference(x_nchw, wq, bq, wk, bk, wv, bv, gamma):
    """Pure-JAX f32 reference mirroring the PyTorch forward."""
    B, C, H, W = x_nchw.shape
    N = H * W
    x_flat = x_nchw.reshape(B, C, N)                                       # (B, C, N)
    q = jnp.einsum('oc,bcn->bon', wq, x_flat) + bq[None, :, None]          # (B, Cq, N)
    k = jnp.einsum('oc,bcn->bon', wk, x_flat) + bk[None, :, None]          # (B, Cq, N)
    v = jnp.einsum('oc,bcn->bon', wv, x_flat) + bv[None, :, None]          # (B, C, N)
    energy = jnp.einsum('bcn,bcm->bnm', q, k)                              # (B, N, N)
    attn = jax.nn.softmax(energy, axis=-1)
    out = jnp.einsum('bcm,bnm->bcn', v, attn)                              # (B, C, N)
    out = out.reshape(B, C, H, W)
    return gamma * out + x_nchw


if __name__ == "__main__":
    key = jax.random.PRNGKey(0)
    B, C, H, W = 2, 32, 16, 16        # N = H*W = 256 tokens (lane-dense), Cq = 4
    Cq = C // 8

    k_x, k_wq, k_bq, k_wk, k_bk, k_wv, k_bv = jax.random.split(key, 7)
    x = jax.random.normal(k_x, (B, C, H, W), jnp.float32)
    # Conv2d(C, Cout, 1) weights stored as (Cout, Cin) since the kernel is 1x1.
    wq = jax.random.normal(k_wq, (Cq, C), jnp.float32) * 0.1
    bq = jax.random.normal(k_bq, (Cq,), jnp.float32) * 0.1
    wk = jax.random.normal(k_wk, (Cq, C), jnp.float32) * 0.1
    bk = jax.random.normal(k_bk, (Cq,), jnp.float32) * 0.1
    wv = jax.random.normal(k_wv, (C, C), jnp.float32) * 0.1
    bv = jax.random.normal(k_bv, (C,), jnp.float32) * 0.1

    # Module-faithful init: gamma = 0 (output == residual input).
    gamma0 = jnp.zeros((), jnp.float32)
    out0 = jax.block_until_ready(
        self_attention_pallas(x, wq, bq, wk, bk, wv, bv, gamma0))
    ref0 = self_attention_reference(x, wq, bq, wk, bk, wv, bv, gamma0)
    # bf16 matmul inputs + approx reciprocal -> relaxed tolerances vs f32 reference.
    assert jnp.allclose(out0, ref0, atol=5e-2, rtol=5e-2), \
        float(jnp.max(jnp.abs(out0 - ref0)))

    # Non-zero gamma so the full attention path is exercised.
    gamma1 = jnp.asarray(0.5, jnp.float32)
    out1 = jax.block_until_ready(
        self_attention_pallas(x, wq, bq, wk, bk, wv, bv, gamma1))
    ref1 = self_attention_reference(x, wq, bq, wk, bk, wv, bv, gamma1)
    assert jnp.allclose(out1, ref1, atol=5e-2, rtol=5e-2), \
        float(jnp.max(jnp.abs(out1 - ref1)))

    print("KERNEL_OK")
</pallas_src>

<mosaic_0001>
module attributes {stable_mosaic.version = 11 : i64} {
  func.func @_self_attention_kernel(%arg0: i32, %arg1: memref<1x32x256xbf16, #tpu.memory_space<vmem>>, %arg2: memref<48x32xbf16, #tpu.memory_space<vmem>>, %arg3: memref<48x1xf32, #tpu.memory_space<vmem>>, %arg4: memref<1x1xf32, #tpu.memory_space<smem>>, %arg5: memref<1x32x256xf32, #tpu.memory_space<vmem>>) attributes {dimension_semantics = [#tpu.dimension_semantics<parallel>], iteration_bounds = array<i64: 2>, scalar_prefetch = 0 : i64, scratch_operands = 0 : i64, tpu.core_type = #tpu.core_type<tc>, window_params = [{transform_indices = @transform_0, window_bounds = array<i64: 1, 32, 256>}, {pipeline_mode = #tpu.pipeline_mode<synchronous>, transform_indices = @transform_1, window_bounds = array<i64: 48, 32>}, {pipeline_mode = #tpu.pipeline_mode<synchronous>, transform_indices = @transform_2, window_bounds = array<i64: 48, 1>}, {transform_indices = @transform_3, window_bounds = array<i64: 1, 1>}, {transform_indices = @transform_4, window_bounds = array<i64: 1, 32, 256>}]} {
    %c0 = arith.constant 0 : index
    %c0_0 = arith.constant 0 : index
    %0 = memref.load %arg4[%c0, %c0_0] : memref<1x1xf32, #tpu.memory_space<smem>>
    %c0_1 = arith.constant 0 : index
    %c0_2 = arith.constant 0 : index
    %1 = vector.load %arg2[%c0_1, %c0_2] : memref<48x32xbf16, #tpu.memory_space<vmem>>, vector<48x32xbf16>
    %c0_3 = arith.constant 0 : index
    %c0_4 = arith.constant 0 : index
    %2 = vector.load %arg3[%c0_3, %c0_4] : memref<48x1xf32, #tpu.memory_space<vmem>>, vector<48x1xf32>
    %c0_5 = arith.constant 0 : index
    %c0_6 = arith.constant 0 : index
    %c0_7 = arith.constant 0 : index
    %3 = vector.load %arg1[%c0_5, %c0_6, %c0_7] : memref<1x32x256xbf16, #tpu.memory_space<vmem>>, vector<1x32x256xbf16>
    %4 = vector.shape_cast %3 : vector<1x32x256xbf16> to vector<32x256xbf16>
    %cst = arith.constant dense<0.000000e+00> : vector<48x256xf32>
    %5 = tpu.matmul %1, %4, %cst {dimension_numbers = #tpu.dot_dimension_numbers<[1], [0], [0], [1], [0, 0, 1, 1], [], []>} : vector<48x32xbf16>, vector<32x256xbf16>, vector<48x256xf32> -> vector<48x256xf32>
    %6 = vector.broadcast %2 : vector<48x1xf32> to vector<48x256xf32>
    %7 = arith.addf %5, %6 : vector<48x256xf32>
    %8 = vector.extract_strided_slice %7 {offsets = [0, 0], sizes = [8, 256], strides = [1, 1]} : vector<48x256xf32> to vector<8x256xf32>
    %9 = arith.truncf %8 : vector<8x256xf32> to vector<8x256xbf16>
    %10 = vector.extract_strided_slice %7 {offsets = [8, 0], sizes = [8, 256], strides = [1, 1]} : vector<48x256xf32> to vector<8x256xf32>
    %11 = arith.truncf %10 : vector<8x256xf32> to vector<8x256xbf16>
    %12 = vector.extract_strided_slice %7 {offsets = [16, 0], sizes = [32, 256], strides = [1, 1]} : vector<48x256xf32> to vector<32x256xf32>
    %13 = arith.truncf %12 : vector<32x256xf32> to vector<32x256xbf16>
    %cst_8 = arith.constant dense<0.000000e+00> : vector<256x256xf32>
    %14 = tpu.matmul %11, %9, %cst_8 {dimension_numbers = #tpu.dot_dimension_numbers<[0], [0], [1], [1], [0, 1, 1, 1], [], []>} : vector<8x256xbf16>, vector<8x256xbf16>, vector<256x256xf32> -> vector<256x256xf32>
    %cst_9 = arith.constant dense<0xFF800000> : vector<256xf32>
    %15 = vector.multi_reduction <maximumf>, %14, %cst_9 [0] : vector<256x256xf32> to vector<256xf32>
    %16 = vector.shape_cast %15 : vector<256xf32> to vector<1x256xf32>
    %17 = vector.broadcast %16 : vector<1x256xf32> to vector<256x256xf32>
    %18 = arith.subf %14, %17 : vector<256x256xf32>
    %19 = math.exp %18 : vector<256x256xf32>
    %cst_10 = arith.constant dense<0.000000e+00> : vector<256xf32>
    %20 = vector.multi_reduction <add>, %19, %cst_10 [0] : vector<256x256xf32> to vector<256xf32>
    %21 = vector.shape_cast %20 : vector<256xf32> to vector<1x256xf32>
    %22 = tpu.reciprocal %21 {approx = true} : vector<1x256xf32> -> vector<1x256xf32>
    %23 = arith.truncf %19 : vector<256x256xf32> to vector<256x256xbf16>
    %cst_11 = arith.constant dense<0.000000e+00> : vector<32x256xf32>
    %24 = tpu.matmul %13, %23, %cst_11 {dimension_numbers = #tpu.dot_dimension_numbers<[1], [0], [0], [1], [0, 0, 1, 1], [], []>} : vector<32x256xbf16>, vector<256x256xbf16>, vector<32x256xf32> -> vector<32x256xf32>
    %25 = vector.broadcast %22 : vector<1x256xf32> to vector<32x256xf32>
    %26 = arith.mulf %24, %25 : vector<32x256xf32>
    %27 = vector.broadcast %0 : f32 to vector<32x256xf32>
    %28 = arith.mulf %27, %26 : vector<32x256xf32>
    %29 = arith.extf %4 : vector<32x256xbf16> to vector<32x256xf32>
    %30 = arith.addf %28, %29 : vector<32x256xf32>
    %c0_12 = arith.constant 0 : index
    %c0_13 = arith.constant 0 : index
    %c0_14 = arith.constant 0 : index
    %31 = vector.load %arg5[%c0_12, %c0_13, %c0_14] : memref<1x32x256xf32, #tpu.memory_space<vmem>>, vector<1x32x256xf32>
    %32 = vector.shape_cast %31 : vector<1x32x256xf32> to vector<32x256xf32>
    %33 = vector.shape_cast %30 : vector<32x256xf32> to vector<1x32x256xf32>
    tpu.vector_store %arg5[%c0_12, %c0_13, %c0_14], %33 {strides = array<i32>} : memref<1x32x256xf32, #tpu.memory_space<vmem>>, vector<1x32x256xf32>,
    return
  }
  func.func @transform_0(%arg0: i32) -> (i32, i32, i32) {
    %c0_i32 = arith.constant 0 : i32
    %c0_i32_0 = arith.constant 0 : i32
    %c0_i32_1 = arith.constant 0 : i32
    return %arg0, %c0_i32, %c0_i32_0 : i32, i32, i32
  }
  func.func @transform_1(%arg0: i32) -> (i32, i32) {
    %c0_i32 = arith.constant 0 : i32
    %c0_i32_0 = arith.constant 0 : i32
    %c0_i32_1 = arith.constant 0 : i32
    return %c0_i32, %c0_i32_0 : i32, i32
  }
  func.func @transform_2(%arg0: i32) -> (i32, i32) {
    %c0_i32 = arith.constant 0 : i32
    %c0_i32_0 = arith.constant 0 : i32
    %c0_i32_1 = arith.constant 0 : i32
    return %c0_i32, %c0_i32_0 : i32, i32
  }
  func.func @transform_3(%arg0: i32) -> (i32, i32) {
    %c0_i32 = arith.constant 0 : i32
    %c0_i32_0 = arith.constant 0 : i32
    %c0_i32_1 = arith.constant 0 : i32
    return %c0_i32, %c0_i32_0 : i32, i32
  }
  func.func @transform_4(%arg0: i32) -> (i32, i32, i32) {
    %c0_i32 = arith.constant 0 : i32
    %c0_i32_0 = arith.constant 0 : i32
    %c0_i32_1 = arith.constant 0 : i32
    return %arg0, %c0_i32, %c0_i32_0 : i32, i32, i32
  }
}

</mosaic_0001>

<llo_original>
// kernel: tpu_custom_call.1
$region0: #{tpu_custom_call.1}
  #allocation0 [shape = 'u32[]', space=smem, size = 0x4, offset = 0x4, fixed_abs, tag = 'smem constant byte address 0x4 - core index']
  #allocation1 [shape = 'u32[144,128]{1,0:T(1,128)}', space=vmem, size = 0x12000, scoped, tag = 'internal scratch']
  #allocation2 [shape = 'f32[1,1]{1,0:T(1,128)S(6)}', space=smem, size = 0x200, scoped, tag = 'scoped memory for tpu_custom_call.1']
  %s0 = inlined_call_operand.vmem [shape: bf16[2,32,256], index: 0, kind: input, shape index: {}]
  %s1 = inlined_call_operand.vmem [shape: bf16[48,32], index: 1, kind: input, shape index: {}]
  %s2 = inlined_call_operand.vmem [shape: f32[48,1], index: 2, kind: input, shape index: {}]
  %s3 = inlined_call_operand.<no memory space> [shape: f32[1,1], index: 3, kind: input, shape index: {}]
  %s4 = inlined_call_operand.hbm [shape: f32[2,32,256], index: 4, kind: output, shape index: {}]
  %s5 = sld [smem:[#allocation0]]
  $region49: #{tpu_custom_call.1} parent=0
    _
  %s7 = ssub.s32 1, %s5
  %s8 = scalar_select 0, %s7, %s5
  %9 = sst [smem:[#allocation2]] %s3
  $region1: #{tpu_custom_call.1} parent=0
    #allocation3 [shape = 'u8[65536]{0}', space=vmem, size = 0x10000, scoped, tag = 'output window, operand 0']
    #allocation4 [shape = 's32[2]{0}', space=sflag, size = 0x8, scoped, tag = 'scoped memory for tpu_custom_call.1']
    %10 = vsyncpa [#allocation4], 0
    %s11 = scalar_lea.sflag [#allocation4], 1
    %12 = vsyncpa %s11, 0
    loop: start=0, step=1, limit=4
    $region2: #{tpu_custom_call.1} parent=1 // loop_pre_header
      _
    $region3: #{tpu_custom_call.1} parent=1 // loop_header
      %s14 = sphi 0, %s18
      %p15 = scmp.ge.s32.totalorder %s14, 4
      %s24 = sphi 0, %s26
      %s27 = sphi 0, %s24
      %s28 = sphi 0, %s27
      %s44 = sphi 0, %s28
      %s48 = sphi 0, %s48
      %s50 = sphi 0, %s48
      %s51 = sphi 0, %s50
      %s65 = sphi 0, %s51
      %s69 = sphi 0, %s69
      %s71 = sphi 0, %s69
      %s72 = sphi 0, %s71
      %s86 = sphi 0, %s72
      %s90 = sphi 0, %s90
      %s92 = sphi 0, %s90
      %s93 = sphi 0, %s92
      %s107 = sphi 0, %s93
      %s113 = sphi 0, %s115
      %s116 = sphi 0, %s113
      %s117 = sphi 0, %s116
      %s133 = sphi 0, %s117
    $region4: #{tpu_custom_call.1} parent=1 // loop_header_branch
      %17 = sbr.rel (%p15) target = $region8
    $region5: #{tpu_custom_call.1} parent=1 // loop_body
      %s19 = ssub.s32 %s14, 1
      %s20 = ssub.s32 %s14, 2
      %s21 = sadd.s32 %s14, 1
      %s22 = ssub.s32 %s14, %s21
      %p23 = scmp.eq.s32.totalorder %s22, 0
      %s25 = sadd.s32 %s24, 1
      %s26 = scalar_select %p23, %s24, %s25
      %p29 = pneg %p23
      %p30 = scmp.eq.s32.totalorder %s14, 1
      %p31 = por %p29, %p30
      %p32 = scmp.ne.s32.totalorder %s24, %s27
      %p33 = scmp.eq.s32.totalorder %s14, 0
      %p34 = por %p32, %p33
      %p35 = scmp.ne.s32.totalorder %s24, %s27
      %p36 = scmp.eq.s32.totalorder %s19, 1
      %p37 = por %p35, %p36
      %p38 = scmp.ne.s32.totalorder %s27, %s28
      %p39 = scmp.eq.s32.totalorder %s19, 0
      %p40 = por %p38, %p39
      %p41 = scmp.ne.s32.totalorder %s27, %s28
      %p42 = scmp.eq.s32.totalorder %s20, 1
      %p43 = por %p41, %p42
      %p45 = scmp.ne.s32.totalorder %s28, %s44
      %p46 = scmp.eq.s32.totalorder %s20, 0
      %p47 = por %p45, %p46
      %s49 = sadd.s32 %s48, 1
      %p52 = scmp.eq.s32.totalorder %s14, 1
      %p53 = scmp.ne.s32.totalorder %s48, %s50
      %p54 = scmp.eq.s32.totalorder %s14, 0
      %p55 = por %p53, %p54
      %p56 = scmp.ne.s32.totalorder %s48, %s50
      %p57 = scmp.eq.s32.totalorder %s19, 1
      %p58 = por %p56, %p57
      %p59 = scmp.ne.s32.totalorder %s50, %s51
      %p60 = scmp.eq.s32.totalorder %s19, 0
      %p61 = por %p59, %p60
      %p62 = scmp.ne.s32.totalorder %s50, %s51
      %p63 = scmp.eq.s32.totalorder %s20, 1
      %p64 = por %p62, %p63
      %p66 = scmp.ne.s32.totalorder %s51, %s65
      %p67 = scmp.eq.s32.totalorder %s20, 0
      %p68 = por %p66, %p67
      %s70 = sadd.s32 %s69, 1
      %p73 = scmp.eq.s32.totalorder %s14, 1
      %p74 = scmp.ne.s32.totalorder %s69, %s71
      %p75 = scmp.eq.s32.totalorder %s14, 0
      %p76 = por %p74, %p75
      %p77 = scmp.ne.s32.totalorder %s69, %s71
      %p78 = scmp.eq.s32.totalorder %s19, 1
      %p79 = por %p77, %p78
      %p80 = scmp.ne.s32.totalorder %s71, %s72
      %p81 = scmp.eq.s32.totalorder %s19, 0
      %p82 = por %p80, %p81
      %p83 = scmp.ne.s32.totalorder %s71, %s72
      %p84 = scmp.eq.s32.totalorder %s20, 1
      %p85 = por %p83, %p84
      %p87 = scmp.ne.s32.totalorder %s72, %s86
      %p88 = scmp.eq.s32.totalorder %s20, 0
      %p89 = por %p87, %p88
      %s91 = sadd.s32 %s90, 1
      %p94 = scmp.eq.s32.totalorder %s14, 1
      %p95 = scmp.ne.s32.totalorder %s90, %s92
      %p96 = scmp.eq.s32.totalorder %s14, 0
      %p97 = por %p95, %p96
      %p98 = scmp.ne.s32.totalorder %s90, %s92
      %p99 = scmp.eq.s32.totalorder %s19, 1
      %p100 = por %p98, %p99
      %p101 = scmp.ne.s32.totalorder %s92, %s93
      %p102 = scmp.eq.s32.totalorder %s19, 0
      %p103 = por %p101, %p102
      %p104 = scmp.ne.s32.totalorder %s92, %s93
      %p105 = scmp.eq.s32.totalorder %s20, 1
      %p106 = por %p104, %p105
      %p108 = scmp.ne.s32.totalorder %s93, %s107
      %p109 = scmp.eq.s32.totalorder %s20, 0
      %p110 = por %p108, %p109
      %s111 = ssub.s32 %s14, %s21
      %p112 = scmp.eq.s32.totalorder %s111, 0
      %s114 = sadd.s32 %s113, 1
      %s115 = scalar_select %p112, %s113, %s114
      %p118 = pneg %p112
      %p119 = scmp.eq.s32.totalorder %s14, 1
      %p120 = por %p118, %p119
      %p121 = scmp.ne.s32.totalorder %s113, %s116
      %p122 = scmp.eq.s32.totalorder %s14, 0
      %p123 = por %p121, %p122
      %p124 = scmp.ne.s32.totalorder %s113, %s116
      %p125 = scmp.eq.s32.totalorder %s19, 1
      %p126 = por %p124, %p125
      %p127 = scmp.ne.s32.totalorder %s116, %s117
      %p128 = scmp.eq.s32.totalorder %s19, 0
      %p129 = por %p127, %p128
      %p130 = scmp.ne.s32.totalorder %s116, %s117
      %p131 = scmp.eq.s32.totalorder %s20, 1
      %p132 = por %p130, %p131
      %p134 = scmp.ne.s32.totalorder %s117, %s133
      %p135 = scmp.eq.s32.totalorder %s20, 0
      %p136 = por %p134, %p135
      %p137 = scmp.le.s32.totalorder 1, %s14
      %p138 = scmp.lt.s32.totalorder %s14, 3
      %p139 = pnand %p137, %p138
      %p140 = pneg %p139
      // Predicated region
      $region9: #{tpu_custom_call.1} parent=5 // pred_check
        _
      $region10: #{tpu_custom_call.1} parent=5 // pred_check_branch
        %142 = sbr.rel (%p139) target = $region12
      $region11: #{tpu_custom_call.1} parent=5 // pred_region
        %s143 = ssub.s32 %s14, 1
        // Predicated region
        $region13: #{tpu_custom_call.1} parent=11 // pred_check
          %p144 = pneg %p61
        $region14: #{tpu_custom_call.1} parent=11 // pred_check_branch
          %146 = sbr.rel (%p144) target = $region16
        $region15: #{tpu_custom_call.1} parent=11 // pred_region
          _
        $region16: #{tpu_custom_call.1} parent=11 // pred_fallthru
          _
        // Predicated region
        $region17: #{tpu_custom_call.1} parent=11 // pred_check
          %p147 = pneg %p82
        $region18: #{tpu_custom_call.1} parent=11 // pred_check_branch
          %149 = sbr.rel (%p147) target = $region20
        $region19: #{tpu_custom_call.1} parent=11 // pred_region
          _
        $region20: #{tpu_custom_call.1} parent=11 // pred_fallthru
          _
        // Predicated region
        $region21: #{tpu_custom_call.1} parent=11 // pred_check
          %p150 = pneg %p103
        $region22: #{tpu_custom_call.1} parent=11 // pred_check_branch
          %152 = sbr.rel (%p150) target = $region24
        $region23: #{tpu_custom_call.1} parent=11 // pred_region
          _
        $region24: #{tpu_custom_call.1} parent=11 // pred_fallthru
          _
      $region12: #{tpu_custom_call.1} parent=5 // pred_fallthru
        _
      %p153 = scmp.lt.s32.totalorder %s14, 2
      // Predicated region
      $region25: #{tpu_custom_call.1} parent=5 // pred_check
        %p154 = pneg %p153
      $region26: #{tpu_custom_call.1} parent=5 // pred_check_branch
        %156 = sbr.rel (%p154) target = $region28
      $region27: #{tpu_custom_call.1} parent=5 // pred_region
        // Predicated region
        $region29: #{tpu_custom_call.1} parent=27 // pred_check
          %p157 = pneg %p34
        $region30: #{tpu_custom_call.1} parent=27 // pred_check_branch
          %159 = sbr.rel (%p157) target = $region32
        $region31: #{tpu_custom_call.1} parent=27 // pred_region
          %p160 = scmp.lt.s32.totalorder %s14, 1
          %s161 = scalar_select %p160, %s14, 1
          %s162 = smul.addr %s161, 8
          %s163 = smul.addr %s162, 4
          %s164 = scalar_lea.vmem %s0, %s163
        $region32: #{tpu_custom_call.1} parent=27 // pred_fallthru
          _
      $region28: #{tpu_custom_call.1} parent=5 // pred_fallthru
        _
      %p165 = scmp.le.s32.totalorder 1, %s14
      %p166 = scmp.lt.s32.totalorder %s14, 3
      %p167 = pnand %p165, %p166
      %p168 = pneg %p167
      // Predicated region
      $region33: #{tpu_custom_call.1} parent=5 // pred_check
        _
      $region34: #{tpu_custom_call.1} parent=5 // pred_check_branch
        %170 = sbr.rel (%p167) target = $region36
      $region35: #{tpu_custom_call.1} parent=5 // pred_region
        %s171 = ssub.s32 %s14, 1
        %p172 = scmp.lt.s32.totalorder %s19, 1
        %s173 = scalar_select %p172, %s19, 1
        %s174 = smul.addr %s173, 8
        %s175 = smul.addr %s174, 4
        %s176 = scalar_lea.vmem %s0, %s175
        %p177 = pneg %p40
        %p178 = pneg %p37
        %p179 = pneg %p61
        %p180 = pneg %p58
        %p181 = pneg %p82
        %p182 = pneg %p79
        %p183 = pneg %p103
        %p184 = pneg %p100
        %p185 = pneg %p129
        %p186 = pneg %p126
        %s187 = sand.u32 %s116, 1
        %s188 = scalar_lea.sflag [#allocation4], %s187
        %s189 = sand.u32 %s116, 1
        %s190 = smul.addr %s189, 64
        %s191 = scalar_lea.vmem [#allocation3], %s190
        %p192 = scmp.lt.s32.totalorder %s19, 1
        %s193 = scalar_select %p192, %s19, 1
        %s194 = smul.addr %s193, 8
        %s195 = smul.addr %s194, 4
        %s196 = scalar_lea.vmem %s0, %s195
        %s198 = sld [smem:[#allocation2]]
        %v199 = vld [vmem:[%s1] sm:$0xf]
        %v200 = vld [vmem:[%s1 + $0x4] sm:$0xf]
        %v201 = vld [vmem:[%s1 + $0x8] sm:$0xf]
        %v202 = vld [vmem:[%s1 + $0xc] sm:$0xf]
        %v203 = vld [vmem:[%s1 + $0x10] sm:$0xf]
        %v204 = vld [vmem:[%s1 + $0x14] sm:$0xf]
        %v205 = vld [vmem:[%s2] sm:$0xff]
        %v206 = vld [vmem:[%s2 + $0x8] sm:$0xff]
        %v207 = vld [vmem:[%s2 + $0x10] sm:$0xff]
        %v208 = vld [vmem:[%s2 + $0x18] sm:$0xff]
        %v209 = vld [vmem:[%s2 + $0x20] sm:$0xff]
        %v210 = vld [vmem:[%s2 + $0x28] sm:$0xff]
        %v211 = vld [vmem:[%s196] sm:$0xff]
        %v212 = vld [vmem:[%s196 + $0x8] sm:$0xff]
        %v213 = vld [vmem:[%s196 + $0x10] sm:$0xff]
        %v214 = vld [vmem:[%s196 + $0x18] sm:$0xff]
        %216 = vset.pattern.permute.xlu0 0
        %217 = vperm.xlu0 %216, %v205
        %v218 = vpop.permute.xlu0 %217
        %221 = vset.pattern.permute.xlu0 0
        %222 = vperm.xlu0 %221, %v206
        %v223 = vpop.permute.xlu0 %222
        %226 = vset.pattern.permute.xlu0 0
        %227 = vperm.xlu0 %226, %v207
        %v228 = vpop.permute.xlu0 %227
        %231 = vset.pattern.permute.xlu0 0
        %232 = vperm.xlu0 %231, %v208
        %v233 = vpop.permute.xlu0 %232
        %236 = vset.pattern.permute.xlu0 0
        %237 = vperm.xlu0 %236, %v209
        %v238 = vpop.permute.xlu0 %237
        %241 = vset.pattern.permute.xlu0 0
        %242 = vperm.xlu0 %241, %v210
        %v243 = vpop.permute.xlu0 %242
        %v251 = vunpack.c.l.b16 %v199
        %v252 = vunpack.c.l.b16 %v200
        %v253 = vunpack.c.l.b16 %v201
        %v254 = vunpack.c.l.b16 %v202
        %v255 = vunpack.c.l.b16 %v203
        %v256 = vunpack.c.l.b16 %v204
        %v257 = vpack.c.b16 %v252, %v251
        %v258 = vpack.c.b16 %v254, %v253
        %v259 = vpack.c.b16 %v256, %v255
        %v264 = vunpack.c.l.b16 %v211
        %v265 = vunpack.c.h.b16 %v211
        %v266 = vunpack.c.l.b16 %v212
        %v267 = vunpack.c.h.b16 %v212
        %v268 = vunpack.c.l.b16 %v213
        %v269 = vunpack.c.h.b16 %v213
        %v270 = vunpack.c.l.b16 %v214
        %v271 = vunpack.c.h.b16 %v214
        %v272 = vpack.c.b16 %v266, %v264
        %v273 = vpack.c.b16 %v267, %v265
        %v274 = vpack.c.b16 %v270, %v268
        %v275 = vpack.c.b16 %v271, %v269
        %vm280 = vcmask 261120
        %v282 = vsel %vm280, %v257, 0
        %v285 = vsel %vm280, %v258, 0
        %v288 = vsel %vm280, %v259, 0
        %290 = vmatprep.subr.bf16.mxu0 %v273
        %291 = vmatpush1.bf16.msra.mxu0 %v272
        %292 = vmatprep.subr.bf16.mxu0 %v275
        %293 = vmatpush1.bf16.msra.mxu0 %v274
        %294 = vmatprep.subr.bf16.mxu0 0
        %295 = vmatpush1.bf16.msra.mxu0 0
        %296 = vmatprep.subr.bf16.mxu0 0
        %297 = vmatpush1.bf16.msra.mxu0 0
        %298 = vmatprep.subr.bf16.mxu0 0
        %299 = vmatpush1.bf16.msra.mxu0 0
        %300 = vmatprep.subr.bf16.mxu0 0
        %301 = vmatpush1.bf16.msra.mxu0 0
        %302 = vmatprep.subr.bf16.mxu0 0
        %303 = vmatpush1.bf16.msra.mxu0 0
        %304 = vmatprep.subr.bf16.mxu0 0
        %305 = vmatpush1.bf16.msra.mxu0 0
        %306 = vmatprep.subr.bf16.mxu0 0
        %307 = vmatpush1.bf16.msra.mxu0 0
        %308 = vmatprep.subr.bf16.mxu0 0
        %309 = vmatpush1.bf16.msra.mxu0 0
        %310 = vmatprep.subr.bf16.mxu0 0
        %311 = vmatpush1.bf16.msra.mxu0 0
        %312 = vmatprep.subr.bf16.mxu0 0
        %313 = vmatpush1.bf16.msra.mxu0 0
        %314 = vmatprep.subr.bf16.mxu0 0
        %315 = vmatpush1.bf16.msra.mxu0 0
        %316 = vmatprep.subr.bf16.mxu0 0
        %317 = vmatpush1.bf16.msra.mxu0 0
        %318 = vmatprep.subr.bf16.mxu0 0
        %319 = vmatpush1.bf16.msra.mxu0 0
        %320 = vmatprep.subr.bf16.mxu0 0
        %321 = vmatpush1.bf16.msra.mxu0 0
        %322 = vmatprep.mubr.bf16.mxu0 0
        %323 = vmatmul.mubr.bf16.gmra.mrb[0].mxu0 %v282
        %v324 = vpop.f32.mrb[0].mxu0
        %v325 = vadd.f32 %v218, %v324
        %v326 = vpop.f32.mrb[0].mxu0
        %v327 = vadd.f32 %v218, %v326
        %v328 = vpop.f32.mrb[0].mxu0
        %v329 = vadd.f32 %v223, %v328
        %v330 = vpop.f32.mrb[0].mxu0
        %v331 = vadd.f32 %v223, %v330
        %332 = vmatprep.mubr.bf16.mxu0 0
        %333 = vmatmul.mubr.bf16.gmra.mrb[0].mxu0 %v285
        %v334 = vpop.f32.mrb[0].mxu0
        %v335 = vadd.f32 %v228, %v334
        %v336 = vpop.f32.mrb[0].mxu0
        %v337 = vadd.f32 %v228, %v336
        %v338 = vpop.f32.mrb[0].mxu0
        %v339 = vadd.f32 %v233, %v338
        %v340 = vpop.f32.mrb[0].mxu0
        %v341 = vadd.f32 %v233, %v340
        %342 = vmatprep.mubr.bf16.mxu0 0
        %343 = vmatmul.mubr.bf16.gmra.mrb[0].mxu0 %v288
        %v344 = vpop.f32.mrb[0].mxu0
        %v345 = vadd.f32 %v238, %v344
        %v346 = vpop.f32.mrb[0].mxu0
        %v347 = vadd.f32 %v238, %v346
        %v348 = vpop.f32.mrb[0].mxu0
        %v349 = vadd.f32 %v243, %v348
        %v350 = vpop.f32.mrb[0].mxu0
        %v351 = vadd.f32 %v243, %v350
        %352 = vdwg.mxu0
        %v353 = vpack.c.bf16 %v325, %v325
        %v354 = vpack.c.bf16 %v327, %v327
        %v355 = vpack.c.bf16 %v329, %v329
        %v356 = vpack.c.bf16 %v331, %v331
        %v357 = vpack.c.bf16 %v339, %v335
        %v358 = vpack.c.bf16 %v341, %v337
        %v359 = vpack.c.bf16 %v349, %v345
        %v360 = vpack.c.bf16 %v351, %v347
        %361 = vxpose.xlu0.c.b16.start [1/8] %v355, 128
        %362 = vxpose.xlu0.c.b16.cont [2/8] 0, 128
        %363 = vxpose.xlu0.c.b16.cont [3/8] 0, 128
        %364 = vxpose.xlu0.c.b16.cont [4/8] 0, 128
        %365 = vxpose.xlu0.c.b16.cont [5/8] 0, 128
        %366 = vxpose.xlu0.c.b16.cont [6/8] 0, 128
        %367 = vxpose.xlu0.c.b16.cont [7/8] 0, 128
        %368 = vxpose.xlu0.c.b16.end [8/8] 0, 128
        %v369 = vpop.trf.xlu0
        %v370 = vpop.trf.xlu0
        %v371 = vpop.trf.xlu0
        %v372 = vpop.trf.xlu0
        %v373 = vpop.trf.xlu0
        %v374 = vpop.trf.xlu0
        %v375 = vpop.trf.xlu0
        %v376 = vpop.trf.xlu0
        %377 = vxpose.xlu0.c.b16.start [1/8] %v356, 128
        %378 = vxpose.xlu0.c.b16.cont [2/8] 0, 128
        %379 = vxpose.xlu0.c.b16.cont [3/8] 0, 128
        %380 = vxpose.xlu0.c.b16.cont [4/8] 0, 128
        %381 = vxpose.xlu0.c.b16.cont [5/8] 0, 128
        %382 = vxpose.xlu0.c.b16.cont [6/8] 0, 128
        %383 = vxpose.xlu0.c.b16.cont [7/8] 0, 128
        %384 = vxpose.xlu0.c.b16.end [8/8] 0, 128
        %v385 = vpop.trf.xlu0
        %v386 = vpop.trf.xlu0
        %v387 = vpop.trf.xlu0
        %v388 = vpop.trf.xlu0
        %v389 = vpop.trf.xlu0
        %v390 = vpop.trf.xlu0
        %v391 = vpop.trf.xlu0
        %v392 = vpop.trf.xlu0
        %vm393 = vcmask 64512
        %v395 = vsel %vm393, %v369, 0
        %v398 = vsel %vm393, %v370, 0
        %v401 = vsel %vm393, %v371, 0
        %v404 = vsel %vm393, %v372, 0
        %v407 = vsel %vm393, %v373, 0
        %v410 = vsel %vm393, %v374, 0
        %v413 = vsel %vm393, %v375, 0
        %v416 = vsel %vm393, %v376, 0
        %v419 = vsel %vm393, %v385, 0
        %v422 = vsel %vm393, %v386, 0
        %v425 = vsel %vm393, %v387, 0
        %v428 = vsel %vm393, %v388, 0
        %v431 = vsel %vm393, %v389, 0
        %v434 = vsel %vm393, %v390, 0
        %v437 = vsel %vm393, %v391, 0
        %v440 = vsel %vm393, %v392, 0
        %vm442 = vcmask 1043456
        %v444 = vsel %vm442, %v353, 0
        %v447 = vsel %vm442, %v354, 0
        %449 = vmatprep.subr.bf16.mxu0 %v447
        %450 = vmatpush1.bf16.msra.mxu0 %v444
        %451 = vmatprep.subr.bf16.mxu0 0
        %452 = vmatpush1.bf16.msra.mxu0 0
        %453 = vmatprep.subr.bf16.mxu0 0
        %454 = vmatpush1.bf16.msra.mxu0 0
        %455 = vmatprep.subr.bf16.mxu0 0
        %456 = vmatpush1.bf16.msra.mxu0 0
        %457 = vmatprep.subr.bf16.mxu0 0
        %458 = vmatpush1.bf16.msra.mxu0 0
        %459 = vmatprep.subr.bf16.mxu0 0
        %460 = vmatpush1.bf16.msra.mxu0 0
        %461 = vmatprep.subr.bf16.mxu0 0
        %462 = vmatpush1.bf16.msra.mxu0 0
        %463 = vmatprep.subr.bf16.mxu0 0
        %464 = vmatpush1.bf16.msra.mxu0 0
        %465 = vmatprep.subr.bf16.mxu0 0
        %466 = vmatpush1.bf16.msra.mxu0 0
        %467 = vmatprep.subr.bf16.mxu0 0
        %468 = vmatpush1.bf16.msra.mxu0 0
        %469 = vmatprep.subr.bf16.mxu0 0
        %470 = vmatpush1.bf16.msra.mxu0 0
        %471 = vmatprep.subr.bf16.mxu0 0
        %472 = vmatpush1.bf16.msra.mxu0 0
        %473 = vmatprep.subr.bf16.mxu0 0
        %474 = vmatpush1.bf16.msra.mxu0 0
        %475 = vmatprep.subr.bf16.mxu0 0
        %476 = vmatpush1.bf16.msra.mxu0 0
        %477 = vmatprep.subr.bf16.mxu0 0
        %478 = vmatpush1.bf16.msra.mxu0 0
        %479 = vmatprep.subr.bf16.mxu0 0
        %480 = vmatpush1.bf16.msra.mxu0 0
        %481 = vmatprep.mubr.bf16.mxu0 0
        %482 = vmatmul.mubr.bf16.gmra.mrb[0].mxu0 %v395
        %v483 = vpop.f32.mrb[0].mxu0
        %v484 = vadd.f32 0.0, %v483
        %v485 = vpop.f32.mrb[0].mxu0
        %v486 = vadd.f32 0.0, %v485
        %v487 = vpop.f32.mrb[0].mxu0
        %v488 = vadd.f32 0.0, %v487
        %v489 = vpop.f32.mrb[0].mxu0
        %v490 = vadd.f32 0.0, %v489
        %491 = vmatprep.mubr.bf16.mxu0 0
        %492 = vmatmul.mubr.bf16.gmra.mrb[0].mxu0 %v398
        %v493 = vpop.f32.mrb[0].mxu0
        %v494 = vadd.f32 0.0, %v493
        %v495 = vpop.f32.mrb[0].mxu0
        %v496 = vadd.f32 0.0, %v495
        %v497 = vpop.f32.mrb[0].mxu0
        %v498 = vadd.f32 0.0, %v497
        %v499 = vpop.f32.mrb[0].mxu0
        %v500 = vadd.f32 0.0, %v499
        %501 = vmatprep.mubr.bf16.mxu0 0
        %502 = vmatmul.mubr.bf16.gmra.mrb[0].mxu0 %v401
        %v503 = vpop.f32.mrb[0].mxu0
        %v504 = vadd.f32 0.0, %v503
        %v505 = vpop.f32.mrb[0].mxu0
        %v506 = vadd.f32 0.0, %v505
        %v507 = vpop.f32.mrb[0].mxu0
        %v508 = vadd.f32 0.0, %v507
        %v509 = vpop.f32.mrb[0].mxu0
        %v510 = vadd.f32 0.0, %v509
        %511 = vmatprep.mubr.bf16.mxu0 0
        %512 = vmatmul.mubr.bf16.gmra.mrb[0].mxu0 %v404
        %v513 = vpop.f32.mrb[0].mxu0
        %v514 = vadd.f32 0.0, %v513
        %v515 = vpop.f32.mrb[0].mxu0
        %v516 = vadd.f32 0.0, %v515
        %v517 = vpop.f32.mrb[0].mxu0
        %v518 = vadd.f32 0.0, %v517
        %v519 = vpop.f32.mrb[0].mxu0
        %v520 = vadd.f32 0.0, %v519
        %521 = vmatprep.mubr.bf16.mxu0 0
        %522 = vmatmul.mubr.bf16.gmra.mrb[0].mxu0 %v407
        %v523 = vpop.f32.mrb[0].mxu0
        %v524 = vadd.f32 0.0, %v523
        %v525 = vpop.f32.mrb[0].mxu0
        %v526 = vadd.f32 0.0, %v525
        %v527 = vpop.f32.mrb[0].mxu0
        %v528 = vadd.f32 0.0, %v527
        %v529 = vpop.f32.mrb[0].mxu0
        %v530 = vadd.f32 0.0, %v529
        %531 = vmatprep.mubr.bf16.mxu0 0
        %532 = vmatmul.mubr.bf16.gmra.mrb[0].mxu0 %v410
        %v533 = vpop.f32.mrb[0].mxu0
        %v534 = vadd.f32 0.0, %v533
        %v535 = vpop.f32.mrb[0].mxu0
        %v536 = vadd.f32 0.0, %v535
        %v537 = vpop.f32.mrb[0].mxu0
        %v538 = vadd.f32 0.0, %v537
        %v539 = vpop.f32.mrb[0].mxu0
        %v540 = vadd.f32 0.0, %v539
        %541 = vmatprep.mubr.bf16.mxu0 0
        %542 = vmatmul.mubr.bf16.gmra.mrb[0].mxu0 %v413
        %v543 = vpop.f32.mrb[0].mxu0
        %v544 = vadd.f32 0.0, %v543
        %v545 = vpop.f32.mrb[0].mxu0
        %v546 = vadd.f32 0.0, %v545
        %v547 = vpop.f32.mrb[0].mxu0
        %v548 = vadd.f32 0.0, %v547
        %v549 = vpop.f32.mrb[0].mxu0
        %v550 = vadd.f32 0.0, %v549
        %551 = vmatprep.mubr.bf16.mxu0 0
        %552 = vmatmul.mubr.bf16.gmra.mrb[0].mxu0 %v416
        %v553 = vpop.f32.mrb[0].mxu0
        %v554 = vadd.f32 0.0, %v553
        %v555 = vpop.f32.mrb[0].mxu0
        %v556 = vadd.f32 0.0, %v555
        %v557 = vpop.f32.mrb[0].mxu0
        %v558 = vadd.f32 0.0, %v557
        %v559 = vpop.f32.mrb[0].mxu0
        %v560 = vadd.f32 0.0, %v559
        %561 = vmatprep.mubr.bf16.mxu0 0
        %562 = vmatmul.mubr.bf16.gmra.mrb[0].mxu0 %v419
        %v563 = vpop.f32.mrb[0].mxu0
        %v564 = vadd.f32 0.0, %v563
        %v565 = vpop.f32.mrb[0].mxu0
        %v566 = vadd.f32 0.0, %v565
        %v567 = vpop.f32.mrb[0].mxu0
        %v568 = vadd.f32 0.0, %v567
        %v569 = vpop.f32.mrb[0].mxu0
        %v570 = vadd.f32 0.0, %v569
        %571 = vmatprep.mubr.bf16.mxu0 0
        %572 = vmatmul.mubr.bf16.gmra.mrb[0].mxu0 %v422
        %v573 = vpop.f32.mrb[0].mxu0
        %v574 = vadd.f32 0.0, %v573
        %v575 = vpop.f32.mrb[0].mxu0
        %v576 = vadd.f32 0.0, %v575
        %v577 = vpop.f32.mrb[0].mxu0
        %v578 = vadd.f32 0.0, %v577
        %v579 = vpop.f32.mrb[0].mxu0
        %v580 = vadd.f32 0.0, %v579
        %581 = vmatprep.mubr.bf16.mxu0 0
        %582 = vmatmul.mubr.bf16.gmra.mrb[0].mxu0 %v425
        %v583 = vpop.f32.mrb[0].mxu0
        %v584 = vadd.f32 0.0, %v583
        %v585 = vpop.f32.mrb[0].mxu0
        %v586 = vadd.f32 0.0, %v585
        %v587 = vpop.f32.mrb[0].mxu0
        %v588 = vadd.f32 0.0, %v587
        %v589 = vpop.f32.mrb[0].mxu0
        %v590 = vadd.f32 0.0, %v589
        %591 = vmatprep.mubr.bf16.mxu0 0
        %592 = vmatmul.mubr.bf16.gmra.mrb[0].mxu0 %v428
        %v593 = vpop.f32.mrb[0].mxu0
        %v594 = vadd.f32 0.0, %v593
        %v595 = vpop.f32.mrb[0].mxu0
        %v596 = vadd.f32 0.0, %v595
        %v597 = vpop.f32.mrb[0].mxu0
        %v598 = vadd.f32 0.0, %v597
        %v599 = vpop.f32.mrb[0].mxu0
        %v600 = vadd.f32 0.0, %v599
        %601 = vmatprep.mubr.bf16.mxu0 0
        %602 = vmatmul.mubr.bf16.gmra.mrb[0].mxu0 %v431
        %v603 = vpop.f32.mrb[0].mxu0
        %v604 = vadd.f32 0.0, %v603
        %v605 = vpop.f32.mrb[0].mxu0
        %v606 = vadd.f32 0.0, %v605
        %v607 = vpop.f32.mrb[0].mxu0
        %v608 = vadd.f32 0.0, %v607
        %v609 = vpop.f32.mrb[0].mxu0
        %v610 = vadd.f32 0.0, %v609
        %611 = vmatprep.mubr.bf16.mxu0 0
        %612 = vmatmul.mubr.bf16.gmra.mrb[0].mxu0 %v434
        %v613 = vpop.f32.mrb[0].mxu0
        %v614 = vadd.f32 0.0, %v613
        %v615 = vpop.f32.mrb[0].mxu0
        %v616 = vadd.f32 0.0, %v615
        %v617 = vpop.f32.mrb[0].mxu0
        %v618 = vadd.f32 0.0, %v617
        %v619 = vpop.f32.mrb[0].mxu0
        %v620 = vadd.f32 0.0, %v619
        %621 = vmatprep.mubr.bf16.mxu0 0
        %622 = vmatmul.mubr.bf16.gmra.mrb[0].mxu0 %v437
        %v623 = vpop.f32.mrb[0].mxu0
        %v624 = vadd.f32 0.0, %v623
        %v625 = vpop.f32.mrb[0].mxu0
        %v626 = vadd.f32 0.0, %v625
        %v627 = vpop.f32.mrb[0].mxu0
        %v628 = vadd.f32 0.0, %v627
        %v629 = vpop.f32.mrb[0].mxu0
        %v630 = vadd.f32 0.0, %v629
        %631 = vmatprep.mubr.bf16.mxu0 0
        %632 = vmatmul.mubr.bf16.gmra.mrb[0].mxu0 %v440
        %v633 = vpop.f32.mrb[0].mxu0
        %v634 = vadd.f32 0.0, %v633
        %v635 = vpop.f32.mrb[0].mxu0
        %v636 = vadd.f32 0.0, %v635
        %v637 = vpop.f32.mrb[0].mxu0
        %v638 = vadd.f32 0.0, %v637
        %v639 = vpop.f32.mrb[0].mxu0
        %v640 = vadd.f32 0.0, %v639
        %641 = vdwg.mxu0
        %v642 = vmax.f32 %v484, %v494
        %v643 = vmax.f32 %v488, %v498
        %v644 = vmax.f32 %v642, %v504
        %v645 = vmax.f32 %v643, %v508
        %v646 = vmax.f32 %v644, %v514
        %v647 = vmax.f32 %v645, %v518
        %v648 = vmax.f32 %v646, %v524
        %v649 = vmax.f32 %v647, %v528
        %v650 = vmax.f32 %v648, %v534
        %v651 = vmax.f32 %v649, %v538
        %v652 = vmax.f32 %v650, %v544
        %v653 = vmax.f32 %v651, %v548
        %v654 = vmax.f32 %v652, %v554
        %v655 = vmax.f32 %v653, %v558
        %v656 = vmax.f32 %v654, %v564
        %v657 = vmax.f32 %v655, %v568
        %v658 = vmax.f32 %v656, %v574
        %v659 = vmax.f32 %v657, %v578
        %v660 = vmax.f32 %v658, %v584
        %v661 = vmax.f32 %v659, %v588
        %v662 = vmax.f32 %v660, %v594
        %v663 = vmax.f32 %v661, %v598
        %v664 = vmax.f32 %v662, %v604
        %v665 = vmax.f32 %v663, %v608
        %v666 = vmax.f32 %v664, %v614
        %v667 = vmax.f32 %v665, %v618
        %v668 = vmax.f32 %v666, %v624
        %v669 = vmax.f32 %v667, %v628
        %v670 = vmax.f32 %v668, %v634
        %v671 = vmax.f32 %v669, %v638
        %v672 = vmax.f32 %v670, %v671
        %v673 = vrot.slane %v672, 4
        %v674 = vmax.f32 %v672, %v673
        %v675 = vrot.slane %v674, 2
        %v676 = vmax.f32 %v674, %v675
        %v677 = vrot.slane %v676, 1
        %v678 = vmax.f32 %v676, %v677
        %v679 = vmax.f32 %v486, %v496
        %v680 = vmax.f32 %v490, %v500
        %v681 = vmax.f32 %v679, %v506
        %v682 = vmax.f32 %v680, %v510
        %v683 = vmax.f32 %v681, %v516
        %v684 = vmax.f32 %v682, %v520
        %v685 = vmax.f32 %v683, %v526
        %v686 = vmax.f32 %v684, %v530
        %v687 = vmax.f32 %v685, %v536
        %v688 = vmax.f32 %v686, %v540
        %v689 = vmax.f32 %v687, %v546
        %v690 = vmax.f32 %v688, %v550
        %v691 = vmax.f32 %v689, %v556
        %v692 = vmax.f32 %v690, %v560
        %v693 = vmax.f32 %v691, %v566
        %v694 = vmax.f32 %v692, %v570
        %v695 = vmax.f32 %v693, %v576
        %v696 = vmax.f32 %v694, %v580
        %v697 = vmax.f32 %v695, %v586
        %v698 = vmax.f32 %v696, %v590
        %v699 = vmax.f32 %v697, %v596
        %v700 = vmax.f32 %v698, %v600
        %v701 = vmax.f32 %v699, %v606
        %v702 = vmax.f32 %v700, %v610
        %v703 = vmax.f32 %v701, %v616
        %v704 = vmax.f32 %v702, %v620
        %v705 = vmax.f32 %v703, %v626
        %v706 = vmax.f32 %v704, %v630
        %v707 = vmax.f32 %v705, %v636
        %v708 = vmax.f32 %v706, %v640
        %v709 = vmax.f32 %v707, %v708
        %v710 = vrot.slane %v709, 4
        %v711 = vmax.f32 %v709, %v710
        %v712 = vrot.slane %v711, 2
        %v713 = vmax.f32 %v711, %v712
        %v714 = vrot.slane %v713, 1
        %v715 = vmax.f32 %v713, %v714
        %v716 = vsub.f32 %v484, %v678
        %v717 = vsub.f32 %v486, %v715
        %v718 = vsub.f32 %v488, %v678
        %v719 = vsub.f32 %v490, %v715
        %v720 = vsub.f32 %v494, %v678
        %v721 = vsub.f32 %v496, %v715
        %v722 = vsub.f32 %v498, %v678
        %v723 = vsub.f32 %v500, %v715
        %v724 = vsub.f32 %v504, %v678
        %v725 = vsub.f32 %v506, %v715
        %v726 = vsub.f32 %v508, %v678
        %v727 = vsub.f32 %v510, %v715
        %v728 = vsub.f32 %v514, %v678
        %v729 = vsub.f32 %v516, %v715
        %v730 = vsub.f32 %v518, %v678
        %v731 = vsub.f32 %v520, %v715
        %v732 = vsub.f32 %v524, %v678
        %v733 = vsub.f32 %v526, %v715
        %v734 = vsub.f32 %v528, %v678
        %v735 = vsub.f32 %v530, %v715
        %v736 = vsub.f32 %v534, %v678
        %v737 = vsub.f32 %v536, %v715
        %v738 = vsub.f32 %v538, %v678
        %v739 = vsub.f32 %v540, %v715
        %v740 = vsub.f32 %v544, %v678
        %v741 = vsub.f32 %v546, %v715
        %v742 = vsub.f32 %v548, %v678
        %v743 = vsub.f32 %v550, %v715
        %v744 = vsub.f32 %v554, %v678
        %v745 = vsub.f32 %v556, %v715
        %v746 = vsub.f32 %v558, %v678
        %v747 = vsub.f32 %v560, %v715
        %v748 = vsub.f32 %v564, %v678
        %v749 = vsub.f32 %v566, %v715
        %v750 = vsub.f32 %v568, %v678
        %v751 = vsub.f32 %v570, %v715
        %v752 = vsub.f32 %v574, %v678
        %v753 = vsub.f32 %v576, %v715
        %v754 = vsub.f32 %v578, %v678
        %v755 = vsub.f32 %v580, %v715
        %v756 = vsub.f32 %v584, %v678
        %v757 = vsub.f32 %v586, %v715
        %v758 = vsub.f32 %v588, %v678
        %v759 = vsub.f32 %v590, %v715
        %v760 = vsub.f32 %v594, %v678
        %v761 = vsub.f32 %v596, %v715
        %v762 = vsub.f32 %v598, %v678
        %v763 = vsub.f32 %v600, %v715
        %v764 = vsub.f32 %v604, %v678
        %v765 = vsub.f32 %v606, %v715
        %v766 = vsub.f32 %v608, %v678
        %v767 = vsub.f32 %v610, %v715
        %v768 = vsub.f32 %v614, %v678
        %v769 = vsub.f32 %v616, %v715
        %v770 = vsub.f32 %v618, %v678
        %v771 = vsub.f32 %v620, %v715
        %v772 = vsub.f32 %v624, %v678
        %v773 = vsub.f32 %v626, %v715
        %v774 = vsub.f32 %v628, %v678
        %v775 = vsub.f32 %v630, %v715
        %v776 = vsub.f32 %v634, %v678
        %v777 = vsub.f32 %v636, %v715
        %v778 = vsub.f32 %v638, %v678
        %v779 = vsub.f32 %v640, %v715
        %v780 = vmul.f32 %v716, 1.442695
        %v781 = vpow.pop %v780
        %v782 = vmul.f32 %v717, 1.442695
        %v783 = vpow.pop %v782
        %v784 = vmul.f32 %v718, 1.442695
        %v785 = vpow.pop %v784
        %v786 = vmul.f32 %v719, 1.442695
        %v787 = vpow.pop %v786
        %v788 = vmul.f32 %v720, 1.442695
        %v789 = vpow.pop %v788
        %v790 = vmul.f32 %v721, 1.442695
        %v791 = vpow.pop %v790
        %v792 = vmul.f32 %v722, 1.442695
        %v793 = vpow.pop %v792
        %v794 = vmul.f32 %v723, 1.442695
        %v795 = vpow.pop %v794
        %v796 = vmul.f32 %v724, 1.442695
        %v797 = vpow.pop %v796
        %v798 = vmul.f32 %v725, 1.442695
        %v799 = vpow.pop %v798
        %v800 = vmul.f32 %v726, 1.442695
        %v801 = vpow.pop %v800
        %v802 = vmul.f32 %v727, 1.442695
        %v803 = vpow.pop %v802
        %v804 = vmul.f32 %v728, 1.442695
        %v805 = vpow.pop %v804
        %v806 = vmul.f32 %v729, 1.442695
        %v807 = vpow.pop %v806
        %v808 = vmul.f32 %v730, 1.442695
        %v809 = vpow.pop %v808
        %v810 = vmul.f32 %v731, 1.442695
        %v811 = vpow.pop %v810
        %v812 = vmul.f32 %v732, 1.442695
        %v813 = vpow.pop %v812
        %v814 = vmul.f32 %v733, 1.442695
        %v815 = vpow.pop %v814
        %v816 = vmul.f32 %v734, 1.442695
        %v817 = vpow.pop %v816
        %v818 = vmul.f32 %v735, 1.442695
        %v819 = vpow.pop %v818
        %v820 = vmul.f32 %v736, 1.442695
        %v821 = vpow.pop %v820
        %v822 = vmul.f32 %v737, 1.442695
        %v823 = vpow.pop %v822
        %v824 = vmul.f32 %v738, 1.442695
        %v825 = vpow.pop %v824
        %v826 = vmul.f32 %v739, 1.442695
        %v827 = vpow.pop %v826
        %v828 = vmul.f32 %v740, 1.442695
        %v829 = vpow.pop %v828
        %v830 = vmul.f32 %v741, 1.442695
        %v831 = vpow.pop %v830
        %v832 = vmul.f32 %v742, 1.442695
        %v833 = vpow.pop %v832
        %v834 = vmul.f32 %v743, 1.442695
        %v835 = vpow.pop %v834
        %v836 = vmul.f32 %v744, 1.442695
        %v837 = vpow.pop %v836
        %v838 = vmul.f32 %v745, 1.442695
        %v839 = vpow.pop %v838
        %v840 = vmul.f32 %v746, 1.442695
        %v841 = vpow.pop %v840
        %v842 = vmul.f32 %v747, 1.442695
        %v843 = vpow.pop %v842
        %v844 = vmul.f32 %v748, 1.442695
        %v845 = vpow.pop %v844
        %v846 = vmul.f32 %v749, 1.442695
        %v847 = vpow.pop %v846
        %v848 = vmul.f32 %v750, 1.442695
        %v849 = vpow.pop %v848
        %v850 = vmul.f32 %v751, 1.442695
        %v851 = vpow.pop %v850
        %v852 = vmul.f32 %v752, 1.442695
        %v853 = vpow.pop %v852
        %v854 = vmul.f32 %v753, 1.442695
        %v855 = vpow.pop %v854
        %v856 = vmul.f32 %v754, 1.442695
        %v857 = vpow.pop %v856
        %v858 = vmul.f32 %v755, 1.442695
        %v859 = vpow.pop %v858
        %v860 = vmul.f32 %v756, 1.442695
        %v861 = vpow.pop %v860
        %v862 = vmul.f32 %v757, 1.442695
        %v863 = vpow.pop %v862
        %v864 = vmul.f32 %v758, 1.442695
        %v865 = vpow.pop %v864
        %v866 = vmul.f32 %v759, 1.442695
        %v867 = vpow.pop %v866
        %v868 = vmul.f32 %v760, 1.442695
        %v869 = vpow.pop %v868
        %v870 = vmul.f32 %v761, 1.442695
        %v871 = vpow.pop %v870
        %v872 = vmul.f32 %v762, 1.442695
        %v873 = vpow.pop %v872
        %v874 = vmul.f32 %v763, 1.442695
        %v875 = vpow.pop %v874
        %v876 = vmul.f32 %v764, 1.442695
        %v877 = vpow.pop %v876
        %v878 = vmul.f32 %v765, 1.442695
        %v879 = vpow.pop %v878
        %v880 = vmul.f32 %v766, 1.442695
        %v881 = vpow.pop %v880
        %v882 = vmul.f32 %v767, 1.442695
        %v883 = vpow.pop %v882
        %v884 = vmul.f32 %v768, 1.442695
        %v885 = vpow.pop %v884
        %v886 = vmul.f32 %v769, 1.442695
        %v887 = vpow.pop %v886
        %v888 = vmul.f32 %v770, 1.442695
        %v889 = vpow.pop %v888
        %v890 = vmul.f32 %v771, 1.442695
        %v891 = vpow.pop %v890
        %v892 = vmul.f32 %v772, 1.442695
        %v893 = vpow.pop %v892
        %v894 = vmul.f32 %v773, 1.442695
        %v895 = vpow.pop %v894
        %v896 = vmul.f32 %v774, 1.442695
        %v897 = vpow.pop %v896
        %v898 = vmul.f32 %v775, 1.442695
        %v899 = vpow.pop %v898
        %v900 = vmul.f32 %v776, 1.442695
        %v901 = vpow.pop %v900
        %v902 = vmul.f32 %v777, 1.442695
        %v903 = vpow.pop %v902
        %v904 = vmul.f32 %v778, 1.442695
        %v905 = vpow.pop %v904
        %v906 = vmul.f32 %v779, 1.442695
        %v907 = vpow.pop %v906
        %v908 = vadd.f32 %v781, %v785
        %v909 = vadd.f32 %v908, %v789
        %v910 = vadd.f32 %v909, %v793
        %v911 = vadd.f32 %v910, %v797
        %v912 = vadd.f32 %v911, %v801
        %v913 = vadd.f32 %v912, %v805
        %v914 = vadd.f32 %v913, %v809
        %v915 = vadd.f32 %v914, %v813
        %v916 = vadd.f32 %v915, %v817
        %v917 = vadd.f32 %v916, %v821
        %v918 = vadd.f32 %v917, %v825
        %v919 = vadd.f32 %v918, %v829
        %v920 = vadd.f32 %v919, %v833
        %v921 = vadd.f32 %v920, %v837
        %v922 = vadd.f32 %v921, %v841
        %v923 = vadd.f32 %v922, %v845
        %v924 = vadd.f32 %v923, %v849
        %v925 = vadd.f32 %v924, %v853
        %v926 = vadd.f32 %v925, %v857
        %v927 = vadd.f32 %v926, %v861
        %v928 = vadd.f32 %v927, %v865
        %v929 = vadd.f32 %v928, %v869
        %v930 = vadd.f32 %v929, %v873
        %v931 = vadd.f32 %v930, %v877
        %v932 = vadd.f32 %v931, %v881
        %v933 = vadd.f32 %v932, %v885
        %v934 = vadd.f32 %v933, %v889
        %v935 = vadd.f32 %v934, %v893
        %v936 = vadd.f32 %v935, %v897
        %v937 = vadd.f32 %v936, %v901
        %v938 = vadd.f32 %v937, %v905
        %v939 = vrot.slane %v938, 4
        %v940 = vadd.f32 %v938, %v939
        %v941 = vrot.slane %v940, 2
        %v942 = vadd.f32 %v940, %v941
        %v943 = vrot.slane %v942, 1
        %v944 = vadd.f32 %v942, %v943
        %v945 = vadd.f32 %v783, %v787
        %v946 = vadd.f32 %v945, %v791
        %v947 = vadd.f32 %v946, %v795
        %v948 = vadd.f32 %v947, %v799
        %v949 = vadd.f32 %v948, %v803
        %v950 = vadd.f32 %v949, %v807
        %v951 = vadd.f32 %v950, %v811
        %v952 = vadd.f32 %v951, %v815
        %v953 = vadd.f32 %v952, %v819
        %v954 = vadd.f32 %v953, %v823
        %v955 = vadd.f32 %v954, %v827
        %v956 = vadd.f32 %v955, %v831
        %v957 = vadd.f32 %v956, %v835
        %v958 = vadd.f32 %v957, %v839
        %v959 = vadd.f32 %v958, %v843
        %v960 = vadd.f32 %v959, %v847
        %v961 = vadd.f32 %v960, %v851
        %v962 = vadd.f32 %v961, %v855
        %v963 = vadd.f32 %v962, %v859
        %v964 = vadd.f32 %v963, %v863
        %v965 = vadd.f32 %v964, %v867
        %v966 = vadd.f32 %v965, %v871
        %v967 = vadd.f32 %v966, %v875
        %v968 = vadd.f32 %v967, %v879
        %v969 = vadd.f32 %v968, %v883
        %v970 = vadd.f32 %v969, %v887
        %v971 = vadd.f32 %v970, %v891
        %v972 = vadd.f32 %v971, %v895
        %v973 = vadd.f32 %v972, %v899
        %v974 = vadd.f32 %v973, %v903
        %v975 = vadd.f32 %v974, %v907
        %v976 = vrot.slane %v975, 4
        %v977 = vadd.f32 %v975, %v976
        %v978 = vrot.slane %v977, 2
        %v979 = vadd.f32 %v977, %v978
        %v980 = vrot.slane %v979, 1
        %v981 = vadd.f32 %v979, %v980
        %v982 = vrcp.pop %v944
        %v983 = vrcp.pop %v981
        %v984 = vpack.c.bf16 %v785, %v781
        %v985 = vpack.c.bf16 %v787, %v783
        %v986 = vpack.c.bf16 %v793, %v789
        %v987 = vpack.c.bf16 %v795, %v791
        %v988 = vpack.c.bf16 %v801, %v797
        %v989 = vpack.c.bf16 %v803, %v799
        %v990 = vpack.c.bf16 %v809, %v805
        %v991 = vpack.c.bf16 %v811, %v807
        %v992 = vpack.c.bf16 %v817, %v813
        %v993 = vpack.c.bf16 %v819, %v815
        %v994 = vpack.c.bf16 %v825, %v821
        %v995 = vpack.c.bf16 %v827, %v823
        %v996 = vpack.c.bf16 %v833, %v829
        %v997 = vpack.c.bf16 %v835, %v831
        %v998 = vpack.c.bf16 %v841, %v837
        %v999 = vpack.c.bf16 %v843, %v839
        %v1000 = vpack.c.bf16 %v849, %v845
        %v1001 = vpack.c.bf16 %v851, %v847
        %v1002 = vpack.c.bf16 %v857, %v853
        %v1003 = vpack.c.bf16 %v859, %v855
        %v1004 = vpack.c.bf16 %v865, %v861
        %v1005 = vpack.c.bf16 %v867, %v863
        %v1006 = vpack.c.bf16 %v873, %v869
        %v1007 = vpack.c.bf16 %v875, %v871
        %v1008 = vpack.c.bf16 %v881, %v877
        %v1009 = vpack.c.bf16 %v883, %v879
        %v1010 = vpack.c.bf16 %v889, %v885
        %v1011 = vpack.c.bf16 %v891, %v887
        %v1012 = vpack.c.bf16 %v897, %v893
        %v1013 = vpack.c.bf16 %v899, %v895
        %v1014 = vpack.c.bf16 %v905, %v901
        %v1015 = vpack.c.bf16 %v907, %v903
        %1016 = vmatprep.subr.bf16.mxu0 %v985
        %1017 = vmatpush1.bf16.msra.mxu0 %v984
        %1018 = vmatprep.subr.bf16.mxu0 %v987
        %1019 = vmatpush1.bf16.msra.mxu0 %v986
        %1020 = vmatprep.subr.bf16.mxu0 %v989
        %1021 = vmatpush1.bf16.msra.mxu0 %v988
        %1022 = vmatprep.subr.bf16.mxu0 %v991
        %1023 = vmatpush1.bf16.msra.mxu0 %v990
        %1024 = vmatprep.subr.bf16.mxu0 %v993
        %1025 = vmatpush1.bf16.msra.mxu0 %v992
        %1026 = vmatprep.subr.bf16.mxu0 %v995
        %1027 = vmatpush1.bf16.msra.mxu0 %v994
        %1028 = vmatprep.subr.bf16.mxu0 %v997
        %1029 = vmatpush1.bf16.msra.mxu0 %v996
        %1030 = vmatprep.subr.bf16.mxu0 %v999
        %1031 = vmatpush1.bf16.msra.mxu0 %v998
        %1032 = vmatprep.subr.bf16.mxu0 %v1001
        %1033 = vmatpush1.bf16.msra.mxu0 %v1000
        %1034 = vmatprep.subr.bf16.mxu0 %v1003
        %1035 = vmatpush1.bf16.msra.mxu0 %v1002
        %1036 = vmatprep.subr.bf16.mxu0 %v1005
        %1037 = vmatpush1.bf16.msra.mxu0 %v1004
        %1038 = vmatprep.subr.bf16.mxu0 %v1007
        %1039 = vmatpush1.bf16.msra.mxu0 %v1006
        %1040 = vmatprep.subr.bf16.mxu0 %v1009
        %1041 = vmatpush1.bf16.msra.mxu0 %v1008
        %1042 = vmatprep.subr.bf16.mxu0 %v1011
        %1043 = vmatpush1.bf16.msra.mxu0 %v1010
        %1044 = vmatprep.subr.bf16.mxu0 %v1013
        %1045 = vmatpush1.bf16.msra.mxu0 %v1012
        %1046 = vmatprep.subr.bf16.mxu0 %v1015
        %1047 = vmatpush1.bf16.msra.mxu0 %v1014
        %1048 = vmatprep.mubr.bf16.mxu0 %v358
        %1049 = vmatmul.mubr.bf16.gmra.mrb[0].mxu0 %v357
        %v1050 = vpop.f32.mrb[0].mxu0
        %v1051 = vadd.f32 0.0, %v1050
        %v1052 = vpop.f32.mrb[0].mxu0
        %v1053 = vadd.f32 0.0, %v1052
        %v1054 = vpop.f32.mrb[0].mxu0
        %v1055 = vadd.f32 0.0, %v1054
        %v1056 = vpop.f32.mrb[0].mxu0
        %v1057 = vadd.f32 0.0, %v1056
        %1058 = vmatprep.mubr.bf16.mxu0 %v360
        %1059 = vmatmul.mubr.bf16.gmra.mrb[0].mxu0 %v359
        %v1060 = vpop.f32.mrb[0].mxu0
        %v1061 = vadd.f32 0.0, %v1060
        %v1062 = vpop.f32.mrb[0].mxu0
        %v1063 = vadd.f32 0.0, %v1062
        %v1064 = vpop.f32.mrb[0].mxu0
        %v1065 = vadd.f32 0.0, %v1064
        %v1066 = vpop.f32.mrb[0].mxu0
        %v1067 = vadd.f32 0.0, %v1066
        %1068 = vdwg.mxu0
        %v1069 = vmul.f32 %v1051, %v982
        %v1070 = vmul.f32 %v1053, %v983
        %v1071 = vmul.f32 %v1055, %v982
        %v1072 = vmul.f32 %v1057, %v983
        %v1073 = vmul.f32 %v1061, %v982
        %v1074 = vmul.f32 %v1063, %v983
        %v1075 = vmul.f32 %v1065, %v982
        %v1076 = vmul.f32 %v1067, %v983
        %v1077 = vstv %s198
        %v1078 = vmul.f32 %v1077, %v1069
        %v1079 = vmul.f32 %v1077, %v1070
        %v1080 = vmul.f32 %v1077, %v1071
        %v1081 = vmul.f32 %v1077, %v1072
        %v1082 = vmul.f32 %v1077, %v1073
        %v1083 = vmul.f32 %v1077, %v1074
        %v1084 = vmul.f32 %v1077, %v1075
        %v1085 = vmul.f32 %v1077, %v1076
        %v1086 = vunpack.c.l.bf16 %v211
        %v1087 = vunpack.c.h.bf16 %v211
        %v1088 = vunpack.c.l.bf16 %v212
        %v1089 = vunpack.c.h.bf16 %v212
        %v1090 = vunpack.c.l.bf16 %v213
        %v1091 = vunpack.c.h.bf16 %v213
        %v1092 = vunpack.c.l.bf16 %v214
        %v1093 = vunpack.c.h.bf16 %v214
        %v1094 = vadd.f32 %v1078, %v1086
        %v1095 = vadd.f32 %v1079, %v1087
        %v1096 = vadd.f32 %v1080, %v1088
        %v1097 = vadd.f32 %v1081, %v1089
        %v1098 = vadd.f32 %v1082, %v1090
        %v1099 = vadd.f32 %v1083, %v1091
        %v1100 = vadd.f32 %v1084, %v1092
        %v1101 = vadd.f32 %v1085, %v1093
        %1102 = vst [vmem:[%s191] sm:$0xff] %v1094
        %1103 = vst [vmem:[%s191 + $0x8] sm:$0xff] %v1095
        %1104 = vst [vmem:[%s191 + $0x10] sm:$0xff] %v1096
        %1105 = vst [vmem:[%s191 + $0x18] sm:$0xff] %v1097
        %1106 = vst [vmem:[%s191 + $0x20] sm:$0xff] %v1098
        %1107 = vst [vmem:[%s191 + $0x28] sm:$0xff] %v1099
        %1108 = vst [vmem:[%s191 + $0x30] sm:$0xff] %v1100
        %1109 = vst [vmem:[%s191 + $0x38] sm:$0xff] %v1101
        %s1110 = sand.u32 %s116, 1
        %s1111 = scalar_lea.sflag [#allocation4], %s1110
        %s1112 = sand.u32 %s116, 1
        %s1113 = smul.addr %s1112, 64
        %s1114 = scalar_lea.vmem [#allocation3], %s1113
        // Predicated region
        $region37: #{tpu_custom_call.1} parent=35 // pred_check
          %p1115 = pneg %p126
        $region38: #{tpu_custom_call.1} parent=35 // pred_check_branch
          %1117 = sbr.rel (%p1115) target = $region40
        $region39: #{tpu_custom_call.1} parent=35 // pred_region
          %s1119 = ssub.s32 1024, 1024
          %1120 = vsyncadd %s1111, %s1119
          %s1121 = smul.addr %s19, 8
          %s1122 = smul.addr %s1121, 128
          %s1123 = scalar_lea.hbm %s4, %s1122
          %s1124 = sshll.u32 %s1114, 4
          %s1125 = int_to_ptr.vmem [resolvable:$true] %s1124
          %1130 = dma.vmem_to_hbm [thread:$0]  %s1125, 1024, %s1123, %s1111, 256, 256, 16
        $region40: #{tpu_custom_call.1} parent=35 // pred_fallthru
          _
      $region36: #{tpu_custom_call.1} parent=5 // pred_fallthru
        _
      %p1131 = scmp.le.s32.totalorder 2, %s14
      // Predicated region
      $region41: #{tpu_custom_call.1} parent=5 // pred_check
        %p1132 = pneg %p1131
      $region42: #{tpu_custom_call.1} parent=5 // pred_check_branch
        %1134 = sbr.rel (%p1132) target = $region44
      $region43: #{tpu_custom_call.1} parent=5 // pred_region
        %s1135 = ssub.s32 %s14, 2
        // Predicated region
        $region45: #{tpu_custom_call.1} parent=43 // pred_check
          %p1136 = pneg %p132
        $region46: #{tpu_custom_call.1} parent=43 // pred_check_branch
          %1138 = sbr.rel (%p1136) target = $region48
        $region47: #{tpu_custom_call.1} parent=43 // pred_region
          %s1139 = sand.u32 %s117, 1
          %s1140 = scalar_lea.sflag [#allocation4], %s1139
          %s1141 = sand.u32 %s117, 1
          %s1142 = smul.addr %s1141, 64
          %s1143 = scalar_lea.vmem [#allocation3], %s1142
          %1144 = dma.done %s1140, 1024
        $region48: #{tpu_custom_call.1} parent=43 // pred_fallthru
          _
      $region44: #{tpu_custom_call.1} parent=5 // pred_fallthru
        _
    $region6: #{tpu_custom_call.1} parent=1 // loop_footer
      %s18 = sadd.s32 1, %s14
    $region7: #{tpu_custom_call.1} parent=1 // loop_footer_branch
      %13 = sbr.rel target = $region3
    $region8: #{tpu_custom_call.1} parent=1 // loop_exit
      _
    %1145 = vsyncpa [#allocation4], 1
    %s1146 = scalar_lea.sflag [#allocation4], 1
    %1147 = vsyncpa %s1146, 1

</llo_original>
